<compile_context>
chip_gen: v7x
topology: tpu7x:2x2x1
jax: 0.10.0
libtpu: 0.0.40
codegen_flags: <defaults>
</compile_context>

<pallas_src>
import functools

import jax
import jax.numpy as jnp
from jax.experimental import pallas as pl
from jax.experimental.pallas import tpu as pltpu

_LANES = 128
_SUBLANES = 8
_MIN_TILE = _LANES * _SUBLANES          # 1024 elements
_MAX_TILE_ROWS = 2048                   # 2048*128*4B = 1 MiB f32 per stream


def _bce_partial_kernel(x_ref, t_ref, out_ref, *, n, tile_rows):
    """Per-block masked sum of binary_cross_entropy(sigmoid(x), t).

    Writes an (8,128)-shaped f32 partial sum for this grid block. No shared
    accumulator and no cross-lane reduce, so the grid axis can run fully in
    parallel (v7x megacore) without races.
    """
    i = pl.program_id(0)

    x = x_ref[...].astype(jnp.float32)
    t = t_ref[...].astype(jnp.float32)

    # Stable BCE-with-logits, matching PyTorch's binary_cross_entropy with its
    # per-term log clamp at -100:
    #   log(sigmoid(x))   = -softplus(-x) = -(max(-x,0) + log1p(exp(-|x|)))
    #   log(1-sigmoid(x)) = -softplus( x) = -(max( x,0) + log1p(exp(-|x|)))
    sp = jnp.log1p(jnp.exp(-jnp.abs(x)))
    log_p = jnp.maximum(-(jnp.maximum(-x, 0.0) + sp), -100.0)
    log_1mp = jnp.maximum(-(jnp.maximum(x, 0.0) + sp), -100.0)
    bce = -(t * log_p + (1.0 - t) * log_1mp)

    # Mask padded elements / garbage rows of a partial last block.
    # int32 flat index: fine for < 2^31 total elements.
    rid = jax.lax.broadcasted_iota(jnp.int32, x.shape, 0) + i * tile_rows
    lid = jax.lax.broadcasted_iota(jnp.int32, x.shape, 1)
    valid = rid * _LANES + lid < n
    bce = jnp.where(valid, bce, 0.0)

    # Reduce only along the leading (non-vreg) axis -> (8,128) partial (VPU
    # adds; no XLU cross-lane reduce inside the kernel).
    partial = jnp.sum(bce.reshape(-1, _SUBLANES, _LANES), axis=0)
    out_ref[...] = partial[None, :, :]


def focal_loss(inputs, targets, alpha=2.0, gamma=0.8):
    """Matches FocalLoss.forward: sigmoid -> flatten -> BCE(mean) -> focal."""
    x = inputs.reshape(-1)
    t = targets.reshape(-1)
    n = x.shape[0]

    # Only pad (full-array copy) when the flat length is not already a
    # multiple of 8*128; typical NCHW feature maps take the no-copy path.
    rem = (-n) % _MIN_TILE
    if rem:
        x = jnp.pad(x, (0, rem))
        t = jnp.pad(t, (0, rem))

    rows = (n + rem) // _LANES                    # multiple of 8
    x2 = x.reshape(rows, _LANES)                  # free reshape of contiguous 1-D
    t2 = t.reshape(rows, _LANES)

    tile_rows = min(_MAX_TILE_ROWS, rows)
    n_blocks = (rows + tile_rows - 1) // tile_rows

    kernel = functools.partial(_bce_partial_kernel, n=n, tile_rows=tile_rows)
    in_spec = pl.BlockSpec((tile_rows, _LANES), lambda i: (i, 0))

    partials = pl.pallas_call(
        kernel,
        out_shape=jax.ShapeDtypeStruct((n_blocks, _SUBLANES, _LANES),
                                       jnp.float32),
        grid_spec=pltpu.PrefetchScalarGridSpec(
            num_scalar_prefetch=0,
            grid=(n_blocks,),
            in_specs=[in_spec, in_spec],
            out_specs=pl.BlockSpec((1, _SUBLANES, _LANES),
                                   lambda i: (i, 0, 0)),
        ),
        compiler_params=pltpu.CompilerParams(
            dimension_semantics=("parallel",),
        ),
    )(x2, t2)

    # Tiny final reduction + scalar focal transform in plain JAX.
    bce = jnp.sum(partials) / jnp.float32(n)      # reduction='mean'
    bce_exp = jnp.exp(-bce)
    return alpha * (1.0 - bce_exp) ** gamma * bce


if __name__ == "__main__":
    key = jax.random.PRNGKey(0)
    k1, k2 = jax.random.split(key)
    # Segmentation-style logits, NCHW (2, 4, 16, 16).
    inputs = jax.random.normal(k1, (2, 4, 16, 16), dtype=jnp.float32)
    targets = jax.random.bernoulli(k2, 0.5, (2, 4, 16, 16)).astype(jnp.float32)

    loss = focal_loss(inputs, targets, alpha=2.0, gamma=0.8)
    jax.block_until_ready(loss)

    # Pure-JAX reference of the full forward semantics (PyTorch clamp form).
    p = jax.nn.sigmoid(inputs.reshape(-1))
    tt = targets.reshape(-1)
    bce_ref = jnp.mean(
        -(tt * jnp.maximum(jnp.log(p), -100.0)
          + (1.0 - tt) * jnp.maximum(jnp.log(1.0 - p), -100.0))
    )
    ref = 2.0 * (1.0 - jnp.exp(-bce_ref)) ** 0.8 * bce_ref
    assert jnp.allclose(loss, ref, rtol=1e-5, atol=1e-6), (loss, ref)

    print("KERNEL_OK")
</pallas_src>

<mosaic_0001>
module attributes {stable_mosaic.version = 11 : i64} {
  func.func @_bce_partial_kernel(%arg0: i32, %arg1: memref<16x128xf32, #tpu.memory_space<vmem>>, %arg2: memref<16x128xf32, #tpu.memory_space<vmem>>, %arg3: memref<1x8x128xf32, #tpu.memory_space<vmem>>) attributes {dimension_semantics = [#tpu.dimension_semantics<parallel>], iteration_bounds = array<i64: 1>, scalar_prefetch = 0 : i64, scratch_operands = 0 : i64, tpu.core_type = #tpu.core_type<tc>, window_params = [{transform_indices = @transform_0, window_bounds = array<i64: 16, 128>}, {transform_indices = @transform_1, window_bounds = array<i64: 16, 128>}, {transform_indices = @transform_2, window_bounds = array<i64: 1, 8, 128>}]} {
    %c0 = arith.constant 0 : index
    %c0_0 = arith.constant 0 : index
    %0 = vector.load %arg1[%c0, %c0_0] : memref<16x128xf32, #tpu.memory_space<vmem>>, vector<16x128xf32>
    %c0_1 = arith.constant 0 : index
    %c0_2 = arith.constant 0 : index
    %1 = vector.load %arg2[%c0_1, %c0_2] : memref<16x128xf32, #tpu.memory_space<vmem>>, vector<16x128xf32>
    %2 = math.absf %0 : vector<16x128xf32>
    %cst = arith.constant 0.000000e+00 : f32
    %3 = vector.broadcast %cst : f32 to vector<16x128xf32>
    %4 = arith.subf %3, %2 : vector<16x128xf32>
    %5 = math.exp %4 : vector<16x128xf32>
    %6 = math.log1p %5 : vector<16x128xf32>
    %cst_3 = arith.constant 0.000000e+00 : f32
    %7 = vector.broadcast %cst_3 : f32 to vector<16x128xf32>
    %8 = arith.subf %7, %0 : vector<16x128xf32>
    %cst_4 = arith.constant 0.000000e+00 : f32
    %9 = vector.broadcast %cst_4 : f32 to vector<16x128xf32>
    %10 = arith.maximumf %8, %9 : vector<16x128xf32>
    %11 = arith.addf %10, %6 : vector<16x128xf32>
    %cst_5 = arith.constant 0.000000e+00 : f32
    %12 = vector.broadcast %cst_5 : f32 to vector<16x128xf32>
    %13 = arith.subf %12, %11 : vector<16x128xf32>
    %cst_6 = arith.constant -1.000000e+02 : f32
    %14 = vector.broadcast %cst_6 : f32 to vector<16x128xf32>
    %15 = arith.maximumf %13, %14 : vector<16x128xf32>
    %cst_7 = arith.constant 0.000000e+00 : f32
    %16 = vector.broadcast %cst_7 : f32 to vector<16x128xf32>
    %17 = arith.maximumf %0, %16 : vector<16x128xf32>
    %18 = arith.addf %17, %6 : vector<16x128xf32>
    %cst_8 = arith.constant 0.000000e+00 : f32
    %19 = vector.broadcast %cst_8 : f32 to vector<16x128xf32>
    %20 = arith.subf %19, %18 : vector<16x128xf32>
    %cst_9 = arith.constant -1.000000e+02 : f32
    %21 = vector.broadcast %cst_9 : f32 to vector<16x128xf32>
    %22 = arith.maximumf %20, %21 : vector<16x128xf32>
    %23 = arith.mulf %1, %15 : vector<16x128xf32>
    %cst_10 = arith.constant 1.000000e+00 : f32
    %24 = vector.broadcast %cst_10 : f32 to vector<16x128xf32>
    %25 = arith.subf %24, %1 : vector<16x128xf32>
    %26 = arith.mulf %25, %22 : vector<16x128xf32>
    %27 = arith.addf %23, %26 : vector<16x128xf32>
    %cst_11 = arith.constant 0.000000e+00 : f32
    %28 = vector.broadcast %cst_11 : f32 to vector<16x128xf32>
    %29 = arith.subf %28, %27 : vector<16x128xf32>
    %30 = tpu.iota {dimensions = array<i32: 0>} : vector<16x128xi32>
    %c16_i32 = arith.constant 16 : i32
    %31 = arith.muli %arg0, %c16_i32 : i32
    %32 = vector.broadcast %31 : i32 to vector<16x128xi32>
    %33 = arith.addi %30, %32 : vector<16x128xi32>
    %34 = tpu.iota {dimensions = array<i32: 1>} : vector<16x128xi32>
    %c128_i32 = arith.constant 128 : i32
    %35 = vector.broadcast %c128_i32 : i32 to vector<16x128xi32>
    %36 = arith.muli %33, %35 : vector<16x128xi32>
    %37 = arith.addi %36, %34 : vector<16x128xi32>
    %c2048_i32 = arith.constant 2048 : i32
    %38 = vector.broadcast %c2048_i32 : i32 to vector<16x128xi32>
    %39 = arith.cmpi slt, %37, %38 : vector<16x128xi32>
    %cst_12 = arith.constant 0.000000e+00 : f32
    %40 = vector.broadcast %cst_12 : f32 to vector<16x128xf32>
    %41 = arith.select %39, %29, %40 : vector<16x128xi1>, vector<16x128xf32>
    %42 = vector.shape_cast %41 : vector<16x128xf32> to vector<2x8x128xf32>
    %cst_13 = arith.constant dense<0.000000e+00> : vector<8x128xf32>
    %43 = vector.multi_reduction <add>, %42, %cst_13 [0] : vector<2x8x128xf32> to vector<8x128xf32>
    %44 = vector.shape_cast %43 : vector<8x128xf32> to vector<1x8x128xf32>
    %c0_14 = arith.constant 0 : index
    %c0_15 = arith.constant 0 : index
    %c0_16 = arith.constant 0 : index
    %45 = vector.load %arg3[%c0_14, %c0_15, %c0_16] : memref<1x8x128xf32, #tpu.memory_space<vmem>>, vector<1x8x128xf32>
    tpu.vector_store %arg3[%c0_14, %c0_15, %c0_16], %44 {strides = array<i32>} : memref<1x8x128xf32, #tpu.memory_space<vmem>>, vector<1x8x128xf32>,
    return
  }
  func.func @transform_0(%arg0: i32) -> (i32, i32) {
    %c0_i32 = arith.constant 0 : i32
    %c0_i32_0 = arith.constant 0 : i32
    return %arg0, %c0_i32 : i32, i32
  }
  func.func @transform_1(%arg0: i32) -> (i32, i32) {
    %c0_i32 = arith.constant 0 : i32
    %c0_i32_0 = arith.constant 0 : i32
    return %arg0, %c0_i32 : i32, i32
  }
  func.func @transform_2(%arg0: i32) -> (i32, i32, i32) {
    %c0_i32 = arith.constant 0 : i32
    %c0_i32_0 = arith.constant 0 : i32
    %c0_i32_1 = arith.constant 0 : i32
    return %arg0, %c0_i32, %c0_i32_0 : i32, i32, i32
  }
}

</mosaic_0001>

<llo_original>
// kernel: tpu_custom_call.1
$region0: #{tpu_custom_call.1}
  #allocation0 [shape = 'u32[]', space=smem, size = 0x4, offset = 0x4, fixed_abs, tag = 'smem constant byte address 0x4 - core index']
  #allocation1 [shape = 'u32[144,128]{1,0:T(1,128)}', space=vmem, size = 0x12000, scoped, tag = 'internal scratch']
  %s0 = inlined_call_operand.hbm [shape: f32[16,128], index: 0, kind: input, shape index: {}]
  %s1 = inlined_call_operand.hbm [shape: f32[16,128], index: 1, kind: input, shape index: {}]
  %s2 = inlined_call_operand.hbm [shape: f32[1,8,128], index: 2, kind: output, shape index: {}]
  %s3 = sld [smem:[#allocation0]]
  $region26: #{tpu_custom_call.1} parent=0
    _
  %s5 = ssub.s32 1, %s3
  %s6 = scalar_select 0, %s5, %s3
  $region1: #{tpu_custom_call.1} parent=0
    #allocation2 [shape = 'u8[8192]{0}', space=vmem, size = 0x2000, scoped, tag = 'input window, operand 0, single buffered']
    #allocation3 [shape = 's32[1]{0}', space=sflag, size = 0x4, scoped, tag = 'scoped memory for tpu_custom_call.1']
    #allocation4 [shape = 's32[1]{0}', space=sflag, size = 0x4, scoped, tag = 'scoped memory for tpu_custom_call.1']
    #allocation5 [shape = 'u8[8192]{0}', space=vmem, size = 0x2000, scoped, tag = 'input window, operand 1, single buffered']
    #allocation6 [shape = 's32[1]{0}', space=sflag, size = 0x4, scoped, tag = 'scoped memory for tpu_custom_call.1']
    #allocation7 [shape = 'u8[4096]{0}', space=vmem, size = 0x1000, scoped, tag = 'output window, operand 0, single buffered']
    %7 = vsyncpa [#allocation3], 0
    %8 = vsyncpa [#allocation6], 0
    %9 = vsyncpa [#allocation4], 0
    // Predicated region
    $region2: #{tpu_custom_call.1} parent=1 // pred_check
      _
    $region3: #{tpu_custom_call.1} parent=1 // pred_check_branch
      %11 = sbr.rel (0) target = $region5
    $region4: #{tpu_custom_call.1} parent=1 // pred_region
      %s13 = ssub.s32 256, 256
      %14 = vsyncadd [#allocation3], %s13
      %s15 = sshll.u32 [#allocation2], 4
      %s16 = int_to_ptr.vmem [resolvable:$true] %s15
      %21 = dma.hbm_to_vmem [thread:$0]  %s0, 256, %s16, [#allocation3], 128, 128, 8
    $region5: #{tpu_custom_call.1} parent=1 // pred_fallthru
      _
    // Predicated region
    $region6: #{tpu_custom_call.1} parent=1 // pred_check
      _
    $region7: #{tpu_custom_call.1} parent=1 // pred_check_branch
      %23 = sbr.rel (0) target = $region9
    $region8: #{tpu_custom_call.1} parent=1 // pred_region
      %s25 = ssub.s32 256, 256
      %26 = vsyncadd [#allocation6], %s25
      %s27 = sshll.u32 [#allocation5], 4
      %s28 = int_to_ptr.vmem [resolvable:$true] %s27
      %33 = dma.hbm_to_vmem [thread:$0]  %s1, 256, %s28, [#allocation6], 128, 128, 8
    $region9: #{tpu_custom_call.1} parent=1 // pred_fallthru
      _
    // Predicated region
    $region10: #{tpu_custom_call.1} parent=1 // pred_check
      _
    $region11: #{tpu_custom_call.1} parent=1 // pred_check_branch
      %35 = sbr.rel (0) target = $region13
    $region12: #{tpu_custom_call.1} parent=1 // pred_region
      %36 = dma.done [#allocation3], 256
    $region13: #{tpu_custom_call.1} parent=1 // pred_fallthru
      _
    // Predicated region
    $region14: #{tpu_custom_call.1} parent=1 // pred_check
      _
    $region15: #{tpu_custom_call.1} parent=1 // pred_check_branch
      %38 = sbr.rel (0) target = $region17
    $region16: #{tpu_custom_call.1} parent=1 // pred_region
      %39 = dma.done [#allocation6], 256
    $region17: #{tpu_custom_call.1} parent=1 // pred_fallthru
      _
    %v40 = vld [vmem:[#allocation2] sm:$0xff]
    %v41 = vld [vmem:[#allocation2 + $0x8] sm:$0xff]
    %v42 = vld [vmem:[#allocation5] sm:$0xff]
    %v43 = vld [vmem:[#allocation5 + $0x8] sm:$0xff]
    %v44 = vand.u32 2147483647, %v40
    %v45 = vand.u32 2147483647, %v41
    %v46 = vsub.f32 0.0, %v44
    %v47 = vsub.f32 0.0, %v45
    %v48 = vmul.f32 %v46, 1.442695
    %v49 = vpow.pop %v48
    %v50 = vmul.f32 %v47, 1.442695
    %v51 = vpow.pop %v50
    %v52 = vadd.f32 %v49, 1.0
    %v53 = vlog2.pop %v52
    %v54 = vmul.f32 %v53, 0.6931472
    %v55 = vmul.f32 -0.5, %v49
    %v56 = vadd.f32 %v55, 1.0
    %v57 = vmul.f32 %v56, %v49
    %v58 = vand.u32 2147483647, %v49
    %vm59 = vcmp.lt.f32.partialorder %v58, 0.0004427343
    %v60 = vsel %vm59, %v57, %v54
    %v61 = vadd.f32 %v51, 1.0
    %v62 = vlog2.pop %v61
    %v63 = vmul.f32 %v62, 0.6931472
    %v64 = vmul.f32 -0.5, %v51
    %v65 = vadd.f32 %v64, 1.0
    %v66 = vmul.f32 %v65, %v51
    %v67 = vand.u32 2147483647, %v51
    %vm68 = vcmp.lt.f32.partialorder %v67, 0.0004427343
    %v69 = vsel %vm68, %v66, %v63
    %v70 = vsub.f32 0.0, %v40
    %v71 = vsub.f32 0.0, %v41
    %v72 = vmax.f32 %v70, 0.0
    %v73 = vmax.f32 %v71, 0.0
    %v74 = vadd.f32 %v72, %v60
    %v75 = vadd.f32 %v73, %v69
    %v76 = vsub.f32 0.0, %v74
    %v77 = vsub.f32 0.0, %v75
    %v78 = vmax.f32 %v76, -100.0
    %v79 = vmax.f32 %v77, -100.0
    %v80 = vmax.f32 %v40, 0.0
    %v81 = vmax.f32 %v41, 0.0
    %v82 = vadd.f32 %v80, %v60
    %v83 = vadd.f32 %v81, %v69
    %v84 = vsub.f32 0.0, %v82
    %v85 = vsub.f32 0.0, %v83
    %v86 = vmax.f32 %v84, -100.0
    %v87 = vmax.f32 %v85, -100.0
    %v88 = vmul.f32 %v42, %v78
    %v89 = vmul.f32 %v43, %v79
    %v90 = vsub.f32 1.0, %v42
    %v91 = vsub.f32 1.0, %v43
    %v92 = vmul.f32 %v90, %v86
    %v93 = vmul.f32 %v91, %v87
    %v94 = vadd.f32 %v88, %v92
    %v95 = vadd.f32 %v89, %v93
    %v96 = vsub.f32 0.0, %v94
    %v97 = vsub.f32 0.0, %v95
    %v98 = vlaneseq
    %v99 = vshrl.u32 %v98, 7
    %v100 = vadd.s32 %v99, 8
    %s101 = smul.u32 0, 16
    %v102 = vstv %s101
    %v103 = vadd.s32 %v99, %v102
    %v104 = vadd.s32 %v100, %v102
    %v105 = vlaneseq
    %v106 = vand.u32 %v105, 127
    %v107 = vmul.u32 %v103, 128
    %v108 = vmul.u32 %v104, 128
    %v109 = vadd.s32 %v107, %v106
    %v110 = vadd.s32 %v108, %v106
    %vm111 = vcmp.lt.s32.totalorder %v109, 2048
    %vm112 = vcmp.lt.s32.totalorder %v110, 2048
    %v113 = vsel %vm111, %v96, 0.0
    %v114 = vsel %vm112, %v97, 0.0
    %v115 = vadd.f32 %v113, %v114
    %116 = vst [vmem:[#allocation7] sm:$0xff] %v115
    // Predicated region
    $region18: #{tpu_custom_call.1} parent=1 // pred_check
      _
    $region19: #{tpu_custom_call.1} parent=1 // pred_check_branch
      %118 = sbr.rel (0) target = $region21
    $region20: #{tpu_custom_call.1} parent=1 // pred_region
      %s120 = ssub.s32 128, 128
      %121 = vsyncadd [#allocation4], %s120
      %s123 = sshll.u32 [#allocation7], 4
      %s124 = int_to_ptr.vmem [resolvable:$true] %s123
      %126 = dma.vmem_to_hbm [thread:$0]  %s124, 128, %s2, [#allocation4]
    $region21: #{tpu_custom_call.1} parent=1 // pred_fallthru
      _
    // Predicated region
    $region22: #{tpu_custom_call.1} parent=1 // pred_check
      _
    $region23: #{tpu_custom_call.1} parent=1 // pred_check_branch
      %128 = sbr.rel (0) target = $region25
    $region24: #{tpu_custom_call.1} parent=1 // pred_region
      %129 = dma.done [#allocation4], 128
    $region25: #{tpu_custom_call.1} parent=1 // pred_fallthru
      _
    %130 = vsyncpa [#allocation3], 1
    %131 = vsyncpa [#allocation6], 1
    %132 = vsyncpa [#allocation4], 1

</llo_original>
